<compile_context>
chip_gen: v6e
topology: v6e:2x2x1
jax: 0.10.0
libtpu: 0.0.40
codegen_flags: <defaults>
</compile_context>

<pallas_src>
import jax
import jax.numpy as jnp
from jax.experimental import pallas as pl
from jax.experimental.pallas import tpu as pltpu

_LANES = 128
_MAX_TILE_ROWS = 2048          # 2048x128 f32 = 1 MiB per input per step
_MASK_THRESH = 1e-4            # pet_image > 0.0001
_N_CORES = 2                   # leading "parallel" axis (v7x megacore split)
_ACC_ROWS = 48                 # 6 quantities x 8 sublanes


def _make_sums_kernel(tile_rows, per_core, total_rows):
    """Kernel computing the six masked per-lane partial sums for one tile."""

    def kernel(x_ref, p_ref, acc_ref):
        i = pl.program_id(1)

        @pl.when(i == 0)
        def _init():
            acc_ref[...] = jnp.zeros_like(acc_ref)

        # Logical (unclamped) row-block handled by this step.  The index_map
        # clamps the DMA so it always stays in bounds; here we mask off every
        # row past the real data (partial last block / clamped duplicate
        # block), so stale VMEM contents can never contribute.
        g = pl.program_id(0) * per_core + i
        row0 = g * tile_rows
        rows = row0 + jax.lax.broadcasted_iota(
            jnp.int32, (tile_rows, _LANES), 0)
        row_valid = rows < total_rows

        x = x_ref[...].astype(jnp.float32)
        p = p_ref[...].astype(jnp.float32)

        m = row_valid & (p > _MASK_THRESH)
        # Select (not multiply) so stale/NaN values outside the mask vanish.
        xm = jnp.where(m, x, 0.0)
        pm = jnp.where(m, p, 0.0)
        mf = m.astype(jnp.float32)

        def part(q):
            # (tile_rows, 128) -> (8, 128) partial sums: pure elementwise
            # vadds over whole vregs; the sublane/lane reduction is deferred
            # to the JAX epilogue.
            return jnp.sum(q.reshape(-1, 8, _LANES), axis=0)

        quantities = (mf, xm, pm, xm * xm, pm * pm, xm * pm)
        for k, q in enumerate(quantities):
            sl = pl.ds(8 * k, 8)
            acc_ref[sl, :] += part(q)

    return kernel


def _masked_sums(x2d, p2d):
    """Returns (N, Sx, Sp, Sxx, Spp, Sxp) over the mask p > 1e-4."""
    total_rows = x2d.shape[0]                       # multiple of 8
    tile_rows = min(_MAX_TILE_ROWS, total_rows)     # block never exceeds array
    n_blocks = -(-total_rows // tile_rows)
    per_core = -(-n_blocks // _N_CORES)

    def in_map(c, i):
        g = c * per_core + i
        # Clamp so the DMA stays in bounds; the kernel masks the duplicate.
        return (jnp.minimum(g, n_blocks - 1), 0)

    in_spec = pl.BlockSpec((tile_rows, _LANES), in_map)
    out_spec = pl.BlockSpec((_ACC_ROWS, _LANES), lambda c, i: (c, 0))

    kernel = _make_sums_kernel(tile_rows, per_core, total_rows)

    bytes_accessed = (
        total_rows * _LANES * (x2d.dtype.itemsize + p2d.dtype.itemsize)
        + _N_CORES * _ACC_ROWS * _LANES * 4)
    cost = pl.CostEstimate(
        flops=12 * total_rows * _LANES,
        transcendentals=0,
        bytes_accessed=bytes_accessed)

    out = pl.pallas_call(
        kernel,
        out_shape=jax.ShapeDtypeStruct((_N_CORES * _ACC_ROWS, _LANES),
                                       jnp.float32),
        grid_spec=pltpu.PrefetchScalarGridSpec(
            num_scalar_prefetch=0,
            grid=(_N_CORES, per_core),
            in_specs=[in_spec, in_spec],
            out_specs=out_spec,
        ),
        compiler_params=pltpu.CompilerParams(
            dimension_semantics=("parallel", "arbitrary")),
        cost_estimate=cost,
    )(x2d, p2d)

    # Final tiny reduction: (2 cores, 6 quantities, 8 sublanes, 128 lanes).
    sums = out.reshape(_N_CORES, 6, 8, _LANES).sum(axis=(0, 2, 3))
    return sums[0], sums[1], sums[2], sums[3], sums[4], sums[5]


def pet_loss(input_tensor, pet_image):
    """JAX/Pallas equivalent of PetLoss.forward."""
    x = input_tensor.reshape(-1)
    p = pet_image.reshape(-1)
    n = x.shape[0]

    # Pad only when the flat length is not already (8*128)-aligned.  Padded
    # pet values are 0 and fail the mask test, so they contribute nothing.
    pad = (-n) % (8 * _LANES)
    if pad:
        x = jnp.pad(x, (0, pad))
        p = jnp.pad(p, (0, pad))
    rows = (n + pad) // _LANES
    x2d = x.reshape(rows, _LANES)
    p2d = p.reshape(rows, _LANES)

    N, Sx, Sp, Sxx, Spp, Sxp = _masked_sums(x2d, p2d)

    # Closed-form correlation from the masked sums.  Accumulation keeps 1024
    # per-lane f32 partials per quantity, which keeps cancellation error small
    # for realistic PET intensity ranges.
    N_safe = jnp.maximum(N, 1.0)
    Nm1_safe = jnp.maximum(N - 1.0, 1e-12)

    mean_x = Sx / N_safe
    mean_p = Sp / N_safe
    # mean((x - mean_x) * (p - mean_p)) over masked elements (biased, /N)
    cov_mean = Sxp / N_safe - mean_x * mean_p
    # torch.std default: unbiased (N - 1)
    var_x = jnp.maximum(Sxx / Nm1_safe - (N / Nm1_safe) * mean_x * mean_x, 0.0)
    var_p = jnp.maximum(Spp / Nm1_safe - (N / Nm1_safe) * mean_p * mean_p, 0.0)
    std_x = jnp.sqrt(var_x)
    std_p = jnp.sqrt(var_p)

    correlation = cov_mean / (std_x * std_p + 0.001)
    loss = 1.0 - correlation

    # The PyTorch module's data-dependent `return 0` branch becomes a select.
    degenerate = (N < 1e-9) | (Sp < 0.001)
    return jnp.where(degenerate, 0.0, loss)


def _pet_loss_reference(input_tensor, pet_image):
    """Pure-JAX reference mirroring the PyTorch code."""
    x = input_tensor.reshape(-1).astype(jnp.float32)
    p = pet_image.reshape(-1).astype(jnp.float32)
    m = (p > _MASK_THRESH).astype(jnp.float32)
    N = jnp.sum(m)
    Sp = jnp.sum(p * m)
    N_safe = jnp.maximum(N, 1.0)
    Nm1_safe = jnp.maximum(N - 1.0, 1e-12)
    mean_x = jnp.sum(x * m) / N_safe
    mean_p = Sp / N_safe
    cov_mean = jnp.sum((x - mean_x) * (p - mean_p) * m) / N_safe
    std_x = jnp.sqrt(jnp.sum((x - mean_x) ** 2 * m) / Nm1_safe)
    std_p = jnp.sqrt(jnp.sum((p - mean_p) ** 2 * m) / Nm1_safe)
    corr = cov_mean / (std_x * std_p + 0.001)
    return jnp.where((N < 1e-9) | (Sp < 0.001), 0.0, 1.0 - corr)


if __name__ == "__main__":
    key = jax.random.PRNGKey(0)
    k1, k2, k3, k4 = jax.random.split(key, 4)

    # Small NCHW-style test (2048 elements -> single block, core-1 idle path).
    x_small = jax.random.uniform(k1, (2, 4, 16, 16), dtype=jnp.float32)
    p_small = jax.random.uniform(
        k2, (2, 4, 16, 16), dtype=jnp.float32, minval=-0.5, maxval=1.0)
    loss = jax.block_until_ready(pet_loss(x_small, p_small))
    ref = jax.block_until_ready(_pet_loss_reference(x_small, p_small))
    assert jnp.allclose(loss, ref, atol=1e-4, rtol=1e-4), (loss, ref)

    # Multi-block test: 393216 elems -> 3072 rows -> 2 blocks of 2048 rows
    # (one partial), exercising the 2-core split and the row-tail masking.
    x_big = jax.random.uniform(k3, (2, 3, 256, 256), dtype=jnp.float32)
    p_big = jax.random.uniform(
        k4, (2, 3, 256, 256), dtype=jnp.float32, minval=-0.3, maxval=1.0)
    loss_big = jax.block_until_ready(pet_loss(x_big, p_big))
    ref_big = jax.block_until_ready(_pet_loss_reference(x_big, p_big))
    assert jnp.allclose(loss_big, ref_big, atol=1e-4, rtol=1e-4), (
        loss_big, ref_big)

    # Degenerate case: nothing above the mask threshold -> loss must be 0.
    zero_loss = jax.block_until_ready(
        pet_loss(x_small, -jnp.abs(p_small) - 1.0))
    assert float(zero_loss) == 0.0

    print("KERNEL_OK")
</pallas_src>

<mosaic_0001>
module attributes {stable_mosaic.version = 11 : i64} {
  func.func @kernel(%arg0: i32, %arg1: i32, %arg2: memref<16x128xf32, #tpu.memory_space<vmem>>, %arg3: memref<16x128xf32, #tpu.memory_space<vmem>>, %arg4: memref<48x128xf32, #tpu.memory_space<vmem>>) attributes {dimension_semantics = [#tpu.dimension_semantics<parallel>, #tpu.dimension_semantics<arbitrary>], iteration_bounds = array<i64: 2, 1>, scalar_prefetch = 0 : i64, scratch_operands = 0 : i64, tpu.core_type = #tpu.core_type<tc>, window_params = [{transform_indices = @transform_0, window_bounds = array<i64: 16, 128>}, {transform_indices = @transform_1, window_bounds = array<i64: 16, 128>}, {transform_indices = @transform_2, window_bounds = array<i64: 48, 128>}]} {
    %c0_i32 = arith.constant 0 : i32
    %0 = arith.cmpi eq, %arg1, %c0_i32 : i32
    %1 = arith.extui %0 : i1 to i32
    %c0_i32_0 = arith.constant 0 : i32
    %2 = arith.cmpi ne, %1, %c0_i32_0 : i32
    scf.if %2 {
      %cst_32 = arith.constant 0.000000e+00 : f32
      %55 = vector.broadcast %cst_32 : f32 to vector<48x128xf32>
      %c0_33 = arith.constant 0 : index
      %c0_34 = arith.constant 0 : index
      %56 = vector.load %arg4[%c0_33, %c0_34] : memref<48x128xf32, #tpu.memory_space<vmem>>, vector<48x128xf32>
      tpu.vector_store %arg4[%c0_33, %c0_34], %55 {strides = array<i32>} : memref<48x128xf32, #tpu.memory_space<vmem>>, vector<48x128xf32>,
    } else {
    }
    %c1_i32 = arith.constant 1 : i32
    %3 = arith.muli %arg0, %c1_i32 : i32
    %4 = arith.addi %3, %arg1 : i32
    %c16_i32 = arith.constant 16 : i32
    %5 = arith.muli %4, %c16_i32 : i32
    %6 = tpu.iota {dimensions = array<i32: 0>} : vector<16x128xi32>
    %7 = vector.broadcast %5 : i32 to vector<16x128xi32>
    %8 = arith.addi %7, %6 : vector<16x128xi32>
    %c16_i32_1 = arith.constant 16 : i32
    %9 = vector.broadcast %c16_i32_1 : i32 to vector<16x128xi32>
    %10 = arith.cmpi slt, %8, %9 : vector<16x128xi32>
    %c0 = arith.constant 0 : index
    %c0_2 = arith.constant 0 : index
    %11 = vector.load %arg2[%c0, %c0_2] : memref<16x128xf32, #tpu.memory_space<vmem>>, vector<16x128xf32>
    %c0_3 = arith.constant 0 : index
    %c0_4 = arith.constant 0 : index
    %12 = vector.load %arg3[%c0_3, %c0_4] : memref<16x128xf32, #tpu.memory_space<vmem>>, vector<16x128xf32>
    %cst = arith.constant 9.99999974E-5 : f32
    %13 = vector.broadcast %cst : f32 to vector<16x128xf32>
    %14 = arith.cmpf ogt, %12, %13 : vector<16x128xf32>
    %15 = arith.andi %10, %14 : vector<16x128xi1>
    %cst_5 = arith.constant 0.000000e+00 : f32
    %16 = vector.broadcast %cst_5 : f32 to vector<16x128xf32>
    %17 = arith.select %15, %11, %16 : vector<16x128xi1>, vector<16x128xf32>
    %cst_6 = arith.constant 0.000000e+00 : f32
    %18 = vector.broadcast %cst_6 : f32 to vector<16x128xf32>
    %19 = arith.select %15, %12, %18 : vector<16x128xi1>, vector<16x128xf32>
    %20 = arith.extui %15 : vector<16x128xi1> to vector<16x128xi32>
    %21 = arith.sitofp %20 : vector<16x128xi32> to vector<16x128xf32>
    %22 = arith.mulf %17, %17 : vector<16x128xf32>
    %23 = arith.mulf %19, %19 : vector<16x128xf32>
    %24 = arith.mulf %17, %19 : vector<16x128xf32>
    %c0_7 = arith.constant 0 : index
    %c0_8 = arith.constant 0 : index
    %25 = vector.load %arg4[%c0_7, %c0_8] : memref<48x128xf32, #tpu.memory_space<vmem>>, vector<8x128xf32>
    %26 = vector.shape_cast %21 : vector<16x128xf32> to vector<2x8x128xf32>
    %cst_9 = arith.constant dense<0.000000e+00> : vector<8x128xf32>
    %27 = vector.multi_reduction <add>, %26, %cst_9 [0] : vector<2x8x128xf32> to vector<8x128xf32>
    %28 = arith.addf %25, %27 : vector<8x128xf32>
    %c0_10 = arith.constant 0 : index
    %c0_11 = arith.constant 0 : index
    %29 = vector.load %arg4[%c0_10, %c0_11] : memref<48x128xf32, #tpu.memory_space<vmem>>, vector<8x128xf32>
    tpu.vector_store %arg4[%c0_10, %c0_11], %28 {strides = array<i32>} : memref<48x128xf32, #tpu.memory_space<vmem>>, vector<8x128xf32>,
    %c8 = arith.constant 8 : index
    %c0_12 = arith.constant 0 : index
    %30 = vector.load %arg4[%c8, %c0_12] : memref<48x128xf32, #tpu.memory_space<vmem>>, vector<8x128xf32>
    %31 = vector.shape_cast %17 : vector<16x128xf32> to vector<2x8x128xf32>
    %cst_13 = arith.constant dense<0.000000e+00> : vector<8x128xf32>
    %32 = vector.multi_reduction <add>, %31, %cst_13 [0] : vector<2x8x128xf32> to vector<8x128xf32>
    %33 = arith.addf %30, %32 : vector<8x128xf32>
    %c8_14 = arith.constant 8 : index
    %c0_15 = arith.constant 0 : index
    %34 = vector.load %arg4[%c8_14, %c0_15] : memref<48x128xf32, #tpu.memory_space<vmem>>, vector<8x128xf32>
    tpu.vector_store %arg4[%c8_14, %c0_15], %33 {strides = array<i32>} : memref<48x128xf32, #tpu.memory_space<vmem>>, vector<8x128xf32>,
    %c16 = arith.constant 16 : index
    %c0_16 = arith.constant 0 : index
    %35 = vector.load %arg4[%c16, %c0_16] : memref<48x128xf32, #tpu.memory_space<vmem>>, vector<8x128xf32>
    %36 = vector.shape_cast %19 : vector<16x128xf32> to vector<2x8x128xf32>
    %cst_17 = arith.constant dense<0.000000e+00> : vector<8x128xf32>
    %37 = vector.multi_reduction <add>, %36, %cst_17 [0] : vector<2x8x128xf32> to vector<8x128xf32>
    %38 = arith.addf %35, %37 : vector<8x128xf32>
    %c16_18 = arith.constant 16 : index
    %c0_19 = arith.constant 0 : index
    %39 = vector.load %arg4[%c16_18, %c0_19] : memref<48x128xf32, #tpu.memory_space<vmem>>, vector<8x128xf32>
    tpu.vector_store %arg4[%c16_18, %c0_19], %38 {strides = array<i32>} : memref<48x128xf32, #tpu.memory_space<vmem>>, vector<8x128xf32>,
    %c24 = arith.constant 24 : index
    %c0_20 = arith.constant 0 : index
    %40 = vector.load %arg4[%c24, %c0_20] : memref<48x128xf32, #tpu.memory_space<vmem>>, vector<8x128xf32>
    %41 = vector.shape_cast %22 : vector<16x128xf32> to vector<2x8x128xf32>
    %cst_21 = arith.constant dense<0.000000e+00> : vector<8x128xf32>
    %42 = vector.multi_reduction <add>, %41, %cst_21 [0] : vector<2x8x128xf32> to vector<8x128xf32>
    %43 = arith.addf %40, %42 : vector<8x128xf32>
    %c24_22 = arith.constant 24 : index
    %c0_23 = arith.constant 0 : index
    %44 = vector.load %arg4[%c24_22, %c0_23] : memref<48x128xf32, #tpu.memory_space<vmem>>, vector<8x128xf32>
    tpu.vector_store %arg4[%c24_22, %c0_23], %43 {strides = array<i32>} : memref<48x128xf32, #tpu.memory_space<vmem>>, vector<8x128xf32>,
    %c32 = arith.constant 32 : index
    %c0_24 = arith.constant 0 : index
    %45 = vector.load %arg4[%c32, %c0_24] : memref<48x128xf32, #tpu.memory_space<vmem>>, vector<8x128xf32>
    %46 = vector.shape_cast %23 : vector<16x128xf32> to vector<2x8x128xf32>
    %cst_25 = arith.constant dense<0.000000e+00> : vector<8x128xf32>
    %47 = vector.multi_reduction <add>, %46, %cst_25 [0] : vector<2x8x128xf32> to vector<8x128xf32>
    %48 = arith.addf %45, %47 : vector<8x128xf32>
    %c32_26 = arith.constant 32 : index
    %c0_27 = arith.constant 0 : index
    %49 = vector.load %arg4[%c32_26, %c0_27] : memref<48x128xf32, #tpu.memory_space<vmem>>, vector<8x128xf32>
    tpu.vector_store %arg4[%c32_26, %c0_27], %48 {strides = array<i32>} : memref<48x128xf32, #tpu.memory_space<vmem>>, vector<8x128xf32>,
    %c40 = arith.constant 40 : index
    %c0_28 = arith.constant 0 : index
    %50 = vector.load %arg4[%c40, %c0_28] : memref<48x128xf32, #tpu.memory_space<vmem>>, vector<8x128xf32>
    %51 = vector.shape_cast %24 : vector<16x128xf32> to vector<2x8x128xf32>
    %cst_29 = arith.constant dense<0.000000e+00> : vector<8x128xf32>
    %52 = vector.multi_reduction <add>, %51, %cst_29 [0] : vector<2x8x128xf32> to vector<8x128xf32>
    %53 = arith.addf %50, %52 : vector<8x128xf32>
    %c40_30 = arith.constant 40 : index
    %c0_31 = arith.constant 0 : index
    %54 = vector.load %arg4[%c40_30, %c0_31] : memref<48x128xf32, #tpu.memory_space<vmem>>, vector<8x128xf32>
    tpu.vector_store %arg4[%c40_30, %c0_31], %53 {strides = array<i32>} : memref<48x128xf32, #tpu.memory_space<vmem>>, vector<8x128xf32>,
    return
  }
  func.func @transform_0(%arg0: i32, %arg1: i32) -> (i32, i32) {
    %c1_i32 = arith.constant 1 : i32
    %0 = arith.muli %arg0, %c1_i32 : i32
    %1 = arith.addi %0, %arg1 : i32
    %c0_i32 = arith.constant 0 : i32
    %2 = arith.minsi %1, %c0_i32 : i32
    %c0_i32_0 = arith.constant 0 : i32
    %c0_i32_1 = arith.constant 0 : i32
    return %2, %c0_i32_0 : i32, i32
  }
  func.func @transform_1(%arg0: i32, %arg1: i32) -> (i32, i32) {
    %c1_i32 = arith.constant 1 : i32
    %0 = arith.muli %arg0, %c1_i32 : i32
    %1 = arith.addi %0, %arg1 : i32
    %c0_i32 = arith.constant 0 : i32
    %2 = arith.minsi %1, %c0_i32 : i32
    %c0_i32_0 = arith.constant 0 : i32
    %c0_i32_1 = arith.constant 0 : i32
    return %2, %c0_i32_0 : i32, i32
  }
  func.func @transform_2(%arg0: i32, %arg1: i32) -> (i32, i32) {
    %c0_i32 = arith.constant 0 : i32
    %c0_i32_0 = arith.constant 0 : i32
    return %arg0, %c0_i32 : i32, i32
  }
}

</mosaic_0001>

<llo_original>
// kernel: tpu_custom_call.1
$region0: #{tpu_custom_call.1}
  #allocation0 [shape = 'u32[]', space=smem, size = 0x4, offset = 0x4, fixed_abs, tag = 'smem constant byte address 0x4 - core index']
  #allocation1 [shape = 'u32[144,128]{1,0:T(1,128)}', space=vmem, size = 0x12000, scoped, tag = 'internal scratch']
  %s0 = inlined_call_operand.hbm [shape: f32[16,128], index: 0, kind: input, shape index: {}]
  %s1 = inlined_call_operand.hbm [shape: f32[16,128], index: 1, kind: input, shape index: {}]
  %s2 = inlined_call_operand.hbm [shape: f32[96,128], index: 2, kind: output, shape index: {}]
  %s3 = sld [smem:[#allocation0]]
  $region53: #{tpu_custom_call.1} parent=0
    _
  %s5 = ssub.s32 1, %s3
  %s6 = scalar_select 0, %s5, %s3
  $region1: #{tpu_custom_call.1} parent=0
    #allocation2 [shape = 'u8[16384]{0}', space=vmem, size = 0x4000, scoped, tag = 'input window, operand 0']
    #allocation3 [shape = 's32[2]{0}', space=sflag, size = 0x8, scoped, tag = 'scoped memory for tpu_custom_call.1']
    #allocation4 [shape = 's32[2]{0}', space=sflag, size = 0x8, scoped, tag = 'scoped memory for tpu_custom_call.1']
    #allocation5 [shape = 'u8[16384]{0}', space=vmem, size = 0x4000, scoped, tag = 'input window, operand 1']
    #allocation6 [shape = 's32[2]{0}', space=sflag, size = 0x8, scoped, tag = 'scoped memory for tpu_custom_call.1']
    #allocation7 [shape = 'u8[49152]{0}', space=vmem, size = 0xc000, scoped, tag = 'output window, operand 0']
    %7 = vsyncpa [#allocation3], 0
    %s8 = scalar_lea.sflag [#allocation3], 1
    %9 = vsyncpa %s8, 0
    %10 = vsyncpa [#allocation6], 0
    %s11 = scalar_lea.sflag [#allocation6], 1
    %12 = vsyncpa %s11, 0
    %13 = vsyncpa [#allocation4], 0
    %s14 = scalar_lea.sflag [#allocation4], 1
    %15 = vsyncpa %s14, 0
    loop: start=0, step=1, limit=4
    $region2: #{tpu_custom_call.1} parent=1 // loop_pre_header
      _
    $region3: #{tpu_custom_call.1} parent=1 // loop_header
      %s17 = sphi 0, %s21
      %p18 = scmp.ge.s32.totalorder %s17, 4
      %s24 = sphi 0, %s36
      %s25 = sphi 0, %s32
      %s26 = sphi 0, %s24
      %s27 = sphi 0, %s25
      %s28 = sphi 0, %s26
      %s29 = sphi 0, %s27
      %s45 = sphi 0, %s47
      %s48 = sphi 0, %s45
      %s49 = sphi 0, %s48
      %s65 = sphi 0, %s49
      %s77 = sphi 0, %s79
      %s80 = sphi 0, %s77
      %s81 = sphi 0, %s80
      %s97 = sphi 0, %s81
      %s103 = sphi 0, %s105
      %s106 = sphi 0, %s103
      %s107 = sphi 0, %s106
      %s123 = sphi 0, %s107
    $region4: #{tpu_custom_call.1} parent=1 // loop_header_branch
      %20 = sbr.rel (%p18) target = $region8
    $region5: #{tpu_custom_call.1} parent=1 // loop_body
      %s22 = ssub.s32 %s17, 1
      %s23 = ssub.s32 %s17, 2
      %s30 = sadd.s32 1, %s25
      %p31 = scmp.ge.s32.totalorder %s30, 1
      %s32 = scalar_select %p31, 0, %s30
      %s33 = sadd.s32 1, %s24
      %s34 = scalar_select %p31, %s33, %s24
      %p35 = scmp.ge.s32.totalorder %s34, 2
      %s36 = scalar_select %p35, 0, %s34
      %s37 = sadd.s32 %s24, %s25
      %p38 = scmp.lt.s32.totalorder %s37, 0
      %s39 = scalar_select %p38, %s37, 0
      %s40 = sadd.s32 %s36, %s32
      %p41 = scmp.lt.s32.totalorder %s40, 0
      %s42 = scalar_select %p41, %s40, 0
      %s43 = ssub.s32 %s39, %s42
      %p44 = scmp.eq.s32.totalorder %s43, 0
      %s46 = sadd.s32 %s45, 1
      %s47 = scalar_select %p44, %s45, %s46
      %p50 = pneg %p44
      %p51 = scmp.eq.s32.totalorder %s17, 1
      %p52 = por %p50, %p51
      %p53 = scmp.ne.s32.totalorder %s45, %s48
      %p54 = scmp.eq.s32.totalorder %s17, 0
      %p55 = por %p53, %p54
      %p56 = scmp.ne.s32.totalorder %s45, %s48
      %p57 = scmp.eq.s32.totalorder %s22, 1
      %p58 = por %p56, %p57
      %p59 = scmp.ne.s32.totalorder %s48, %s49
      %p60 = scmp.eq.s32.totalorder %s22, 0
      %p61 = por %p59, %p60
      %p62 = scmp.ne.s32.totalorder %s48, %s49
      %p63 = scmp.eq.s32.totalorder %s23, 1
      %p64 = por %p62, %p63
      %p66 = scmp.ne.s32.totalorder %s49, %s65
      %p67 = scmp.eq.s32.totalorder %s23, 0
      %p68 = por %p66, %p67
      %s69 = sadd.s32 %s24, %s25
      %p70 = scmp.lt.s32.totalorder %s69, 0
      %s71 = scalar_select %p70, %s69, 0
      %s72 = sadd.s32 %s36, %s32
      %p73 = scmp.lt.s32.totalorder %s72, 0
      %s74 = scalar_select %p73, %s72, 0
      %s75 = ssub.s32 %s71, %s74
      %p76 = scmp.eq.s32.totalorder %s75, 0
      %s78 = sadd.s32 %s77, 1
      %s79 = scalar_select %p76, %s77, %s78
      %p82 = pneg %p76
      %p83 = scmp.eq.s32.totalorder %s17, 1
      %p84 = por %p82, %p83
      %p85 = scmp.ne.s32.totalorder %s77, %s80
      %p86 = scmp.eq.s32.totalorder %s17, 0
      %p87 = por %p85, %p86
      %p88 = scmp.ne.s32.totalorder %s77, %s80
      %p89 = scmp.eq.s32.totalorder %s22, 1
      %p90 = por %p88, %p89
      %p91 = scmp.ne.s32.totalorder %s80, %s81
      %p92 = scmp.eq.s32.totalorder %s22, 0
      %p93 = por %p91, %p92
      %p94 = scmp.ne.s32.totalorder %s80, %s81
      %p95 = scmp.eq.s32.totalorder %s23, 1
      %p96 = por %p94, %p95
      %p98 = scmp.ne.s32.totalorder %s81, %s97
      %p99 = scmp.eq.s32.totalorder %s23, 0
      %p100 = por %p98, %p99
      %s101 = ssub.s32 %s24, %s36
      %p102 = scmp.eq.s32.totalorder %s101, 0
      %s104 = sadd.s32 %s103, 1
      %s105 = scalar_select %p102, %s103, %s104
      %p108 = pneg %p102
      %p109 = scmp.eq.s32.totalorder %s17, 1
      %p110 = por %p108, %p109
      %p111 = scmp.ne.s32.totalorder %s103, %s106
      %p112 = scmp.eq.s32.totalorder %s17, 0
      %p113 = por %p111, %p112
      %p114 = scmp.ne.s32.totalorder %s103, %s106
      %p115 = scmp.eq.s32.totalorder %s22, 1
      %p116 = por %p114, %p115
      %p117 = scmp.ne.s32.totalorder %s106, %s107
      %p118 = scmp.eq.s32.totalorder %s22, 0
      %p119 = por %p117, %p118
      %p120 = scmp.ne.s32.totalorder %s106, %s107
      %p121 = scmp.eq.s32.totalorder %s23, 1
      %p122 = por %p120, %p121
      %p124 = scmp.ne.s32.totalorder %s107, %s123
      %p125 = scmp.eq.s32.totalorder %s23, 0
      %p126 = por %p124, %p125
      %p127 = scmp.le.s32.totalorder 1, %s17
      %p128 = scmp.lt.s32.totalorder %s17, 3
      %p129 = pnand %p127, %p128
      %p130 = pneg %p129
      // Predicated region
      $region9: #{tpu_custom_call.1} parent=5 // pred_check
        _
      $region10: #{tpu_custom_call.1} parent=5 // pred_check_branch
        %132 = sbr.rel (%p129) target = $region12
      $region11: #{tpu_custom_call.1} parent=5 // pred_region
        %s133 = ssub.s32 %s17, 1
      $region12: #{tpu_custom_call.1} parent=5 // pred_fallthru
        _
      %p134 = scmp.lt.s32.totalorder %s17, 2
      // Predicated region
      $region13: #{tpu_custom_call.1} parent=5 // pred_check
        %p135 = pneg %p134
      $region14: #{tpu_custom_call.1} parent=5 // pred_check_branch
        %137 = sbr.rel (%p135) target = $region16
      $region15: #{tpu_custom_call.1} parent=5 // pred_region
        // Predicated region
        $region17: #{tpu_custom_call.1} parent=15 // pred_check
          %p138 = pneg %p55
        $region18: #{tpu_custom_call.1} parent=15 // pred_check_branch
          %140 = sbr.rel (%p138) target = $region20
        $region19: #{tpu_custom_call.1} parent=15 // pred_region
          %s141 = sand.u32 %s45, 1
          %s142 = scalar_lea.sflag [#allocation3], %s141
          %s143 = sand.u32 %s45, 1
          %s144 = smul.addr %s143, 16
          %s145 = scalar_lea.vmem [#allocation2], %s144
          %s146 = sadd.s32 %s24, %s25
          %p147 = scmp.lt.s32.totalorder %s146, 0
          %s148 = scalar_select %p147, %s146, 0
          %s149 = smul.u32 2, %s148
          %s151 = ssub.s32 256, 256
          %152 = vsyncadd %s142, %s151
          %s153 = smul.addr %s149, 128
          %s154 = scalar_lea.hbm %s0, %s153
          %s155 = sshll.u32 %s145, 4
          %s156 = int_to_ptr.vmem [resolvable:$true] %s155
          %161 = dma.hbm_to_vmem [thread:$0]  %s154, 256, %s156, %s142, 128, 128, 8
        $region20: #{tpu_custom_call.1} parent=15 // pred_fallthru
          _
        // Predicated region
        $region21: #{tpu_custom_call.1} parent=15 // pred_check
          %p162 = pneg %p87
        $region22: #{tpu_custom_call.1} parent=15 // pred_check_branch
          %164 = sbr.rel (%p162) target = $region24
        $region23: #{tpu_custom_call.1} parent=15 // pred_region
          %s165 = sand.u32 %s77, 1
          %s166 = scalar_lea.sflag [#allocation6], %s165
          %s167 = sand.u32 %s77, 1
          %s168 = smul.addr %s167, 16
          %s169 = scalar_lea.vmem [#allocation5], %s168
          %s170 = sadd.s32 %s24, %s25
          %p171 = scmp.lt.s32.totalorder %s170, 0
          %s172 = scalar_select %p171, %s170, 0
          %s173 = smul.u32 2, %s172
          %s175 = ssub.s32 256, 256
          %176 = vsyncadd %s166, %s175
          %s177 = smul.addr %s173, 128
          %s178 = scalar_lea.hbm %s1, %s177
          %s179 = sshll.u32 %s169, 4
          %s180 = int_to_ptr.vmem [resolvable:$true] %s179
          %185 = dma.hbm_to_vmem [thread:$0]  %s178, 256, %s180, %s166, 128, 128, 8
        $region24: #{tpu_custom_call.1} parent=15 // pred_fallthru
          _
      $region16: #{tpu_custom_call.1} parent=5 // pred_fallthru
        _
      %p186 = scmp.le.s32.totalorder 1, %s17
      %p187 = scmp.lt.s32.totalorder %s17, 3
      %p188 = pnand %p186, %p187
      %p189 = pneg %p188
      // Predicated region
      $region25: #{tpu_custom_call.1} parent=5 // pred_check
        _
      $region26: #{tpu_custom_call.1} parent=5 // pred_check_branch
        %191 = sbr.rel (%p188) target = $region28
      $region27: #{tpu_custom_call.1} parent=5 // pred_region
        %s192 = ssub.s32 %s17, 1
        %s193 = sand.u32 %s48, 1
        %s194 = scalar_lea.sflag [#allocation3], %s193
        %s195 = sand.u32 %s48, 1
        %s196 = smul.addr %s195, 16
        %s197 = scalar_lea.vmem [#allocation2], %s196
        // Predicated region
        $region29: #{tpu_custom_call.1} parent=27 // pred_check
          %p198 = pneg %p61
        $region30: #{tpu_custom_call.1} parent=27 // pred_check_branch
          %200 = sbr.rel (%p198) target = $region32
        $region31: #{tpu_custom_call.1} parent=27 // pred_region
          %201 = dma.done %s194, 256
        $region32: #{tpu_custom_call.1} parent=27 // pred_fallthru
          _
        %s202 = sand.u32 %s80, 1
        %s203 = scalar_lea.sflag [#allocation6], %s202
        %s204 = sand.u32 %s80, 1
        %s205 = smul.addr %s204, 16
        %s206 = scalar_lea.vmem [#allocation5], %s205
        // Predicated region
        $region33: #{tpu_custom_call.1} parent=27 // pred_check
          %p207 = pneg %p93
        $region34: #{tpu_custom_call.1} parent=27 // pred_check_branch
          %209 = sbr.rel (%p207) target = $region36
        $region35: #{tpu_custom_call.1} parent=27 // pred_region
          %210 = dma.done %s203, 256
        $region36: #{tpu_custom_call.1} parent=27 // pred_fallthru
          _
        %s211 = sand.u32 %s48, 1
        %s212 = scalar_lea.sflag [#allocation3], %s211
        %s213 = sand.u32 %s48, 1
        %s214 = smul.addr %s213, 16
        %s215 = scalar_lea.vmem [#allocation2], %s214
        %p216 = pneg %p61
        %p217 = pneg %p58
        %s218 = sand.u32 %s80, 1
        %s219 = scalar_lea.sflag [#allocation6], %s218
        %s220 = sand.u32 %s80, 1
        %s221 = smul.addr %s220, 16
        %s222 = scalar_lea.vmem [#allocation5], %s221
        %p223 = pneg %p93
        %p224 = pneg %p90
        %p225 = pneg %p119
        %p226 = pneg %p116
        %s227 = sand.u32 %s106, 1
        %s228 = scalar_lea.sflag [#allocation4], %s227
        %s229 = sand.u32 %s106, 1
        %s230 = smul.addr %s229, 48
        %s231 = scalar_lea.vmem [#allocation7], %s230
        %s232 = sadd.s32 %s26, %s27
        %p233 = scmp.lt.s32.totalorder %s232, 0
        %s234 = scalar_select %p233, %s232, 0
        %s235 = smul.u32 2, %s234
        %s236 = sadd.s32 %s26, %s27
        %p237 = scmp.lt.s32.totalorder %s236, 0
        %s238 = scalar_select %p237, %s236, 0
        %s239 = smul.u32 2, %s238
        %s240 = smul.u32 6, %s26
        %p241 = scmp.eq.s32.totalorder %s27, 0
        // Predicated region
        $region37: #{tpu_custom_call.1} parent=27 // pred_check
          %p242 = pneg %p241
        $region38: #{tpu_custom_call.1} parent=27 // pred_check_branch
          %244 = sbr.rel (%p242) target = $region40
        $region39: #{tpu_custom_call.1} parent=27 // pred_region
          %245 = vst [vmem:[%s231] sm:$0xff] 0.0
          %246 = vst [vmem:[%s231 + $0x8] sm:$0xff] 0.0
          %247 = vst [vmem:[%s231 + $0x10] sm:$0xff] 0.0
          %248 = vst [vmem:[%s231 + $0x18] sm:$0xff] 0.0
          %249 = vst [vmem:[%s231 + $0x20] sm:$0xff] 0.0
          %250 = vst [vmem:[%s231 + $0x28] sm:$0xff] 0.0
        $region40: #{tpu_custom_call.1} parent=27 // pred_fallthru
          _
        %s251 = sadd.s32 %s26, %s27
        %s252 = smul.u32 %s251, 16
        %v253 = vlaneseq
        %v254 = vshrl.u32 %v253, 7
        %v255 = vadd.s32 %v254, 8
        %v256 = vstv %s252
        %v257 = vadd.s32 %v256, %v254
        %v258 = vadd.s32 %v256, %v255
        %vm259 = vcmp.lt.s32.totalorder %v257, 16
        %vm260 = vcmp.lt.s32.totalorder %v258, 16
        %v261 = vld [vmem:[%s197] sm:$0xff]
        %v262 = vld [vmem:[%s197 + $0x8] sm:$0xff]
        %v263 = vld [vmem:[%s206] sm:$0xff]
        %v264 = vld [vmem:[%s206 + $0x8] sm:$0xff]
        %vm265 = vcmp.gt.f32.partialorder %v263, 0.0001
        %vm266 = vcmp.gt.f32.partialorder %v264, 0.0001
        %vm267 = vmand %vm259, %vm265
        %vm268 = vmand %vm260, %vm266
        %v269 = vsel %vm267, %v261, 0.0
        %v270 = vsel %vm268, %v262, 0.0
        %v271 = vsel %vm267, %v263, 0.0
        %v272 = vsel %vm268, %v264, 0.0
        %v273 = vsel %vm267, 1, 0
        %v274 = vsel %vm268, 1, 0
        %v275 = vcvt.s32.f32 %v273
        %v276 = vcvt.s32.f32 %v274
        %v277 = vmul.f32 %v269, %v269
        %v278 = vmul.f32 %v270, %v270
        %v279 = vmul.f32 %v271, %v271
        %v280 = vmul.f32 %v272, %v272
        %v281 = vmul.f32 %v269, %v271
        %v282 = vmul.f32 %v270, %v272
        %v283 = vld [vmem:[%s231] sm:$0xff]
        %v284 = vadd.f32 %v275, %v276
        %v285 = vadd.f32 %v283, %v284
        %286 = vst [vmem:[%s231] sm:$0xff] %v285
        %v287 = vld [vmem:[%s231 + $0x8] sm:$0xff]
        %v288 = vadd.f32 %v269, %v270
        %v289 = vadd.f32 %v287, %v288
        %290 = vst [vmem:[%s231 + $0x8] sm:$0xff] %v289
        %v291 = vld [vmem:[%s231 + $0x10] sm:$0xff]
        %v292 = vadd.f32 %v271, %v272
        %v293 = vadd.f32 %v291, %v292
        %294 = vst [vmem:[%s231 + $0x10] sm:$0xff] %v293
        %v295 = vld [vmem:[%s231 + $0x18] sm:$0xff]
        %v296 = vadd.f32 %v277, %v278
        %v297 = vadd.f32 %v295, %v296
        %298 = vst [vmem:[%s231 + $0x18] sm:$0xff] %v297
        %v299 = vld [vmem:[%s231 + $0x20] sm:$0xff]
        %v300 = vadd.f32 %v279, %v280
        %v301 = vadd.f32 %v299, %v300
        %302 = vst [vmem:[%s231 + $0x20] sm:$0xff] %v301
        %v303 = vld [vmem:[%s231 + $0x28] sm:$0xff]
        %v304 = vadd.f32 %v281, %v282
        %v305 = vadd.f32 %v303, %v304
        %306 = vst [vmem:[%s231 + $0x28] sm:$0xff] %v305
        %s307 = sand.u32 %s106, 1
        %s308 = scalar_lea.sflag [#allocation4], %s307
        %s309 = sand.u32 %s106, 1
        %s310 = smul.addr %s309, 48
        %s311 = scalar_lea.vmem [#allocation7], %s310
        // Predicated region
        $region41: #{tpu_custom_call.1} parent=27 // pred_check
          %p312 = pneg %p116
        $region42: #{tpu_custom_call.1} parent=27 // pred_check_branch
          %314 = sbr.rel (%p312) target = $region44
        $region43: #{tpu_custom_call.1} parent=27 // pred_region
          %s315 = smul.u32 6, %s26
          %s317 = ssub.s32 768, 768
          %318 = vsyncadd %s308, %s317
          %s319 = smul.addr %s315, 128
          %s320 = scalar_lea.hbm %s2, %s319
          %s321 = sshll.u32 %s311, 4
          %s322 = int_to_ptr.vmem [resolvable:$true] %s321
          %327 = dma.vmem_to_hbm [thread:$0]  %s322, 768, %s320, %s308, 128, 128, 8
        $region44: #{tpu_custom_call.1} parent=27 // pred_fallthru
          _
      $region28: #{tpu_custom_call.1} parent=5 // pred_fallthru
        _
      %p328 = scmp.le.s32.totalorder 2, %s17
      // Predicated region
      $region45: #{tpu_custom_call.1} parent=5 // pred_check
        %p329 = pneg %p328
      $region46: #{tpu_custom_call.1} parent=5 // pred_check_branch
        %331 = sbr.rel (%p329) target = $region48
      $region47: #{tpu_custom_call.1} parent=5 // pred_region
        %s332 = ssub.s32 %s17, 2
        // Predicated region
        $region49: #{tpu_custom_call.1} parent=47 // pred_check
          %p333 = pneg %p122
        $region50: #{tpu_custom_call.1} parent=47 // pred_check_branch
          %335 = sbr.rel (%p333) target = $region52
        $region51: #{tpu_custom_call.1} parent=47 // pred_region
          %s336 = sand.u32 %s107, 1
          %s337 = scalar_lea.sflag [#allocation4], %s336
          %s338 = sand.u32 %s107, 1
          %s339 = smul.addr %s338, 48
          %s340 = scalar_lea.vmem [#allocation7], %s339
          %341 = dma.done %s337, 768
        $region52: #{tpu_custom_call.1} parent=47 // pred_fallthru
          _
      $region48: #{tpu_custom_call.1} parent=5 // pred_fallthru
        _
    $region6: #{tpu_custom_call.1} parent=1 // loop_footer
      %s21 = sadd.s32 1, %s17
    $region7: #{tpu_custom_call.1} parent=1 // loop_footer_branch
      %16 = sbr.rel target = $region3
    $region8: #{tpu_custom_call.1} parent=1 // loop_exit
      _
    %342 = vsyncpa [#allocation3], 1
    %s343 = scalar_lea.sflag [#allocation3], 1
    %344 = vsyncpa %s343, 1
    %345 = vsyncpa [#allocation6], 1
    %s346 = scalar_lea.sflag [#allocation6], 1
    %347 = vsyncpa %s346, 1
    %348 = vsyncpa [#allocation4], 1
    %s349 = scalar_lea.sflag [#allocation4], 1
    %350 = vsyncpa %s349, 1

</llo_original>
